<compile_context>
chip_gen: v7x
topology: tpu7x:2x2x1
jax: 0.10.0
libtpu: 0.0.40
codegen_flags: <defaults>
</compile_context>

<pallas_src>
import functools

import jax
import jax.numpy as jnp
from jax.experimental import pallas as pl
from jax.experimental.pallas import tpu as pltpu

EPS = 1e-5

_SLAB_LO = 2 << 20   # aim for per-step x slabs of at least ~2 MiB (DMA efficiency)
_SLAB_HI = 8 << 20   # ... but no more than ~8 MiB (keep the grid long -> pipelined / 2 TCs)


# --------------------------------------------------------------------------- kernels

def _ccn_kernel_chw(x_ref, g_ref, b_ref, o_ref, *, compute_dtype):
    """Channel-major layout.  x_ref/o_ref: (B, c_tile, HW) with HW on lanes.
    g_ref/b_ref: (B, c_tile, 1) class-conditional gain/bias (f32)."""
    B, Ct, HW = x_ref.shape
    inv_n = 1.0 / float(B * HW)          # Python constant -> multiply, not vector divide

    x = x_ref[...]

    # Single-pass per-channel batch stats over (B, HW), f32 accumulation folded into
    # the reductions (no full-size f32 copy, no centered temporary).  Reduce the batch
    # axis first (plain VPU adds), then ONE cross-lane (XLU) reduce per channel row.
    s1 = jnp.sum(jnp.sum(x, axis=0, dtype=jnp.float32), axis=-1, keepdims=True)      # (Ct, 1)
    s2 = jnp.sum(jnp.sum(jnp.square(x.astype(jnp.float32)), axis=0),
                 axis=-1, keepdims=True)                                              # (Ct, 1)
    mean = s1 * inv_n
    var = jnp.maximum(s2 * inv_n - mean * mean, 0.0)      # biased (training-mode) variance
    inv_std = jax.lax.rsqrt(var + EPS)                    # EUP slot

    # Fused affine: out = x * scale + shift   (2 VPU ops / element)
    gain = g_ref[...].astype(jnp.float32)                 # (B, Ct, 1)
    bias = b_ref[...].astype(jnp.float32)
    scale = gain * inv_std[None]                          # (B, Ct, 1)
    shift = bias - mean[None] * scale                     # (B, Ct, 1)
    out = (x.astype(compute_dtype) * scale.astype(compute_dtype)
           + shift.astype(compute_dtype))
    o_ref[...] = out.astype(o_ref.dtype)


def _ccn_kernel_hwc(x_ref, g_ref, b_ref, o_ref, *, compute_dtype):
    """Channels-last layout.  x_ref/o_ref: (B, HW, c_tile) with channels on lanes.
    g_ref/b_ref: (B, 1, c_tile)."""
    B, HW, Ct = x_ref.shape
    inv_n = 1.0 / float(B * HW)

    x = x_ref[...]
    s1 = jnp.sum(jnp.sum(x, axis=0, dtype=jnp.float32), axis=0, keepdims=True)       # (1, Ct)
    s2 = jnp.sum(jnp.sum(jnp.square(x.astype(jnp.float32)), axis=0),
                 axis=0, keepdims=True)                                               # (1, Ct)
    mean = s1 * inv_n
    var = jnp.maximum(s2 * inv_n - mean * mean, 0.0)
    inv_std = jax.lax.rsqrt(var + EPS)                                                # (1, Ct)

    gain = g_ref[...].astype(jnp.float32)                 # (B, 1, Ct)
    bias = b_ref[...].astype(jnp.float32)
    scale = gain * inv_std[None]
    shift = bias - mean[None] * scale
    out = (x.astype(compute_dtype) * scale.astype(compute_dtype)
           + shift.astype(compute_dtype))
    o_ref[...] = out.astype(o_ref.dtype)


# --------------------------------------------------------------------------- sizing

def _tpu_generation():
    try:
        kind = jax.devices()[0].device_kind.lower()
    except Exception:
        return 0
    for g in (7, 6, 5, 4, 3, 2):
        if f"v{g}" in kind or f"tpu{g}" in kind:
            return g
    return 0


def _vmem_capacity_bytes():
    cap = 64 << 20                       # conservative fallback (v7x per-TC VMEM)
    try:
        cap = int(pltpu.get_tpu_info().vmem_capacity_bytes)
    except Exception:
        pass
    if _tpu_generation() >= 7:
        cap = min(cap, 64 << 20)         # budget per TensorCore, not per chip
    return cap


def _slab_bytes(B, ct, HW, itemsize):
    return B * ct * HW * itemsize


def _need_bytes(B, ct, HW, itemsize):
    # 2 double-buffered input slabs + 2 double-buffered output slabs + ~2 live f32
    # working slabs (streamed squares / pre-cast output) + side tables / Mosaic scratch.
    io = _slab_bytes(B, ct, HW, itemsize)
    f32w = B * ct * HW * 4
    return 4 * io + 2 * f32w + (2 << 20)


def _vmem_limit(need, cap):
    # 25% headroom over the estimate, floor at the 32 MiB default scoped limit,
    # cap at ~90% of physical per-core VMEM.
    return int(min(max(int(need * 1.25), 32 << 20), int(cap * 0.9)))


def _pick_c_tile(B, C, HW, itemsize, min_tile, budget):
    """Smallest legal channel tile whose per-step slab reaches ~2 MiB (long grid ->
    pipelined, both v7x TensorCores busy), capped at ~8 MiB and at the VMEM budget."""
    def slab(ct):
        return _slab_bytes(B, ct, HW, itemsize)

    def need(ct):
        return _need_bytes(B, ct, HW, itemsize)

    def check(ct):
        if need(ct) > budget:
            # TODO(synk): add an HW-split two-pass (partial-sum + normalize) path for
            # huge B*H*W instead of failing; for now fail loudly rather than request
            # an over-budget slab and die at compile time.
            raise NotImplementedError(
                f"ClassConditionNorm Pallas kernel: minimum channel tile needs "
                f"~{need(ct)} bytes of VMEM (> budget {budget}) for "
                f"B={B}, C={C}, HW={HW}, itemsize={itemsize}.")
        return ct

    if C <= min_tile or C % min_tile != 0:
        return check(C)                  # full-channel block (legal: equals full dim)

    cands = [d for d in range(min_tile, C + 1, min_tile) if C % d == 0]  # ascending
    pick = None
    for ct in cands:
        if need(ct) > budget or slab(ct) > _SLAB_HI:
            break
        pick = ct
        if slab(ct) >= _SLAB_LO:
            break
    if pick is None:
        pick = check(cands[0])
    # Keep >= 2 grid steps when C allows it so dimension_semantics=('parallel',) can
    # shard channel tiles across v7x's two TensorCores.
    if pick == C and len(cands) >= 2:
        pick = cands[-2]
    return pick


# --------------------------------------------------------------------------- wrapper

def class_condition_norm(x, y, w_gain, w_bias):
    """x: (B, C, H, W) NCHW.  y: (B, K).  w_gain/w_bias: (C, K) PyTorch Linear weights."""
    B, C, H, W = x.shape
    HW = H * W
    itemsize = int(jnp.dtype(x.dtype).itemsize)

    # Class-conditional gain/bias: one tiny fused (B,K)x(K,2C) matmul, hoisted out of
    # the per-tile loop.
    w_cat = jnp.concatenate([w_gain, w_bias], axis=0).astype(jnp.float32)   # (2C, K)
    gb = jnp.dot(y.astype(jnp.float32), w_cat.T)                            # (B, 2C)
    gain = 1.0 + gb[:, :C]                                                  # (B, C)
    bias = gb[:, C:]                                                        # (B, C)

    gen = _tpu_generation()
    # bf16 affine only where the VPU actually executes bf16 (v6e/v7x); f32 on v5e.
    compute_dtype = jnp.bfloat16 if (x.dtype == jnp.bfloat16 and gen >= 6) else jnp.float32

    cap = _vmem_capacity_bytes()
    budget = int(cap * 0.8)

    # Lane-density guard: prefer HW on lanes when it is 128-aligned (no transpose);
    # otherwise use channels-last if C is 128-aligned so stores stay lane-dense.
    channels_last = (HW % 128 != 0) and (C % 128 == 0)

    if not channels_last:
        # TODO(synk): if neither HW nor C is 128-aligned this path still runs correctly
        #             but with masked (partial-lane) stores.
        x3 = x.reshape(B, C, HW)                       # HW on lanes, C on sublanes
        min_tile = {4: 8, 2: 16, 1: 32}.get(itemsize, 8)
        c_tile = _pick_c_tile(B, C, HW, itemsize, min_tile, budget)
        need = _need_bytes(B, c_tile, HW, itemsize)

        out3 = pl.pallas_call(
            functools.partial(_ccn_kernel_chw, compute_dtype=compute_dtype),
            out_shape=jax.ShapeDtypeStruct((B, C, HW), x.dtype),
            grid_spec=pltpu.PrefetchScalarGridSpec(
                num_scalar_prefetch=0,
                grid=(C // c_tile,),
                in_specs=[
                    pl.BlockSpec((B, c_tile, HW), lambda c: (0, c, 0)),
                    pl.BlockSpec((B, c_tile, 1), lambda c: (0, c, 0)),
                    pl.BlockSpec((B, c_tile, 1), lambda c: (0, c, 0)),
                ],
                out_specs=pl.BlockSpec((B, c_tile, HW), lambda c: (0, c, 0)),
            ),
            compiler_params=pltpu.CompilerParams(
                dimension_semantics=("parallel",),
                vmem_limit_bytes=_vmem_limit(need, cap),
            ),
        )(x3, gain[:, :, None], bias[:, :, None])
        return out3.reshape(B, C, H, W)

    # Channels-last path: C on lanes, HW on sublanes.  The transpose is an XLA-side
    # layout change; TODO(synk): accept NHWC activations directly to avoid it.
    xt = x.reshape(B, C, HW).transpose(0, 2, 1)        # (B, HW, C)
    c_tile = _pick_c_tile(B, C, HW, itemsize, 128, budget)
    need = _need_bytes(B, c_tile, HW, itemsize)

    out_t = pl.pallas_call(
        functools.partial(_ccn_kernel_hwc, compute_dtype=compute_dtype),
        out_shape=jax.ShapeDtypeStruct((B, HW, C), x.dtype),
        grid_spec=pltpu.PrefetchScalarGridSpec(
            num_scalar_prefetch=0,
            grid=(C // c_tile,),
            in_specs=[
                pl.BlockSpec((B, HW, c_tile), lambda c: (0, 0, c)),
                pl.BlockSpec((B, 1, c_tile), lambda c: (0, 0, c)),
                pl.BlockSpec((B, 1, c_tile), lambda c: (0, 0, c)),
            ],
            out_specs=pl.BlockSpec((B, HW, c_tile), lambda c: (0, 0, c)),
        ),
        compiler_params=pltpu.CompilerParams(
            dimension_semantics=("parallel",),
            vmem_limit_bytes=_vmem_limit(need, cap),
        ),
    )(xt, gain[:, None, :], bias[:, None, :])
    return out_t.transpose(0, 2, 1).reshape(B, C, H, W)


# --------------------------------------------------------------------------- reference

def _reference(x, y, w_gain, w_bias):
    gain = 1.0 + y @ w_gain.T          # (B, C)
    bias = y @ w_bias.T                # (B, C)
    mean = jnp.mean(x, axis=(0, 2, 3))
    var = jnp.var(x, axis=(0, 2, 3))   # biased
    xn = (x - mean[None, :, None, None]) * jax.lax.rsqrt(var + EPS)[None, :, None, None]
    return xn * gain[:, :, None, None] + bias[:, :, None, None]


if __name__ == "__main__":
    master = jax.random.PRNGKey(0)

    def run_case(B, C, H, W, K, dtype, atol, rtol, key):
        kx, ky, kg, kb = jax.random.split(key, 4)
        x = jax.random.normal(kx, (B, C, H, W), dtype=jnp.float32).astype(dtype)
        y = jax.random.normal(ky, (B, K), dtype=jnp.float32)
        bound = 1.0 / (K ** 0.5)   # nn.Linear(K, C, bias=False) weight shape is (C, K)
        w_gain = jax.random.uniform(kg, (C, K), minval=-bound, maxval=bound, dtype=jnp.float32)
        w_bias = jax.random.uniform(kb, (C, K), minval=-bound, maxval=bound, dtype=jnp.float32)

        out = jax.block_until_ready(class_condition_norm(x, y, w_gain, w_bias))
        ref = _reference(x.astype(jnp.float32), y, w_gain, w_bias)
        assert out.shape == (B, C, H, W) and out.dtype == dtype
        assert jnp.allclose(out.astype(jnp.float32), ref, atol=atol, rtol=rtol), \
            f"mismatch vs reference for shape {(B, C, H, W)} dtype {dtype}"

    k1, k2, k3 = jax.random.split(master, 3)
    # Primary case: H*W 128-aligned -> channel-major layout (HW on lanes).
    run_case(2, 4, 16, 16, 32, jnp.float32, 1e-4, 1e-4, k1)
    # Small spatial / many channels -> channels-last layout (C on lanes), grid of 2.
    run_case(2, 256, 4, 4, 32, jnp.float32, 1e-4, 1e-4, k2)
    # bf16 path (bf16 affine on v6e/v7x, f32 affine on v5e).
    run_case(2, 4, 16, 16, 32, jnp.bfloat16, 6e-2, 6e-2, k3)

    print("KERNEL_OK")
</pallas_src>

<mosaic_0001>
module attributes {stable_mosaic.version = 11 : i64} {
  func.func @_ccn_kernel_chw(%arg0: i32, %arg1: memref<2x4x256xf32, #tpu.memory_space<vmem>>, %arg2: memref<2x4x1xf32, #tpu.memory_space<vmem>>, %arg3: memref<2x4x1xf32, #tpu.memory_space<vmem>>, %arg4: memref<2x4x256xf32, #tpu.memory_space<vmem>>) attributes {dimension_semantics = [#tpu.dimension_semantics<parallel>], iteration_bounds = array<i64: 1>, scalar_prefetch = 0 : i64, scratch_operands = 0 : i64, tpu.core_type = #tpu.core_type<tc>, window_params = [{transform_indices = @transform_0, window_bounds = array<i64: 2, 4, 256>}, {transform_indices = @transform_1, window_bounds = array<i64: 2, 4, 1>}, {transform_indices = @transform_2, window_bounds = array<i64: 2, 4, 1>}, {transform_indices = @transform_3, window_bounds = array<i64: 2, 4, 256>}]} {
    %c0 = arith.constant 0 : index
    %c0_0 = arith.constant 0 : index
    %c0_1 = arith.constant 0 : index
    %0 = vector.load %arg1[%c0, %c0_0, %c0_1] : memref<2x4x256xf32, #tpu.memory_space<vmem>>, vector<2x4x256xf32>
    %cst = arith.constant dense<0.000000e+00> : vector<4x256xf32>
    %1 = vector.multi_reduction <add>, %0, %cst [0] : vector<2x4x256xf32> to vector<4x256xf32>
    %cst_2 = arith.constant dense<0.000000e+00> : vector<4xf32>
    %2 = vector.multi_reduction <add>, %1, %cst_2 [1] : vector<4x256xf32> to vector<4xf32>
    %3 = vector.shape_cast %2 : vector<4xf32> to vector<4x1xf32>
    %4 = arith.mulf %0, %0 : vector<2x4x256xf32>
    %cst_3 = arith.constant dense<0.000000e+00> : vector<4x256xf32>
    %5 = vector.multi_reduction <add>, %4, %cst_3 [0] : vector<2x4x256xf32> to vector<4x256xf32>
    %cst_4 = arith.constant dense<0.000000e+00> : vector<4xf32>
    %6 = vector.multi_reduction <add>, %5, %cst_4 [1] : vector<4x256xf32> to vector<4xf32>
    %7 = vector.shape_cast %6 : vector<4xf32> to vector<4x1xf32>
    %cst_5 = arith.constant 0.001953125 : f32
    %8 = vector.broadcast %cst_5 : f32 to vector<4x1xf32>
    %9 = arith.mulf %3, %8 : vector<4x1xf32>
    %cst_6 = arith.constant 0.001953125 : f32
    %10 = vector.broadcast %cst_6 : f32 to vector<4x1xf32>
    %11 = arith.mulf %7, %10 : vector<4x1xf32>
    %12 = arith.mulf %9, %9 : vector<4x1xf32>
    %13 = arith.subf %11, %12 : vector<4x1xf32>
    %cst_7 = arith.constant 0.000000e+00 : f32
    %14 = vector.broadcast %cst_7 : f32 to vector<4x1xf32>
    %15 = arith.maximumf %13, %14 : vector<4x1xf32>
    %cst_8 = arith.constant 9.99999974E-6 : f32
    %16 = vector.broadcast %cst_8 : f32 to vector<4x1xf32>
    %17 = arith.addf %15, %16 : vector<4x1xf32>
    %18 = math.rsqrt %17 : vector<4x1xf32>
    %c0_9 = arith.constant 0 : index
    %c0_10 = arith.constant 0 : index
    %c0_11 = arith.constant 0 : index
    %19 = vector.load %arg2[%c0_9, %c0_10, %c0_11] : memref<2x4x1xf32, #tpu.memory_space<vmem>>, vector<2x4x1xf32>
    %c0_12 = arith.constant 0 : index
    %c0_13 = arith.constant 0 : index
    %c0_14 = arith.constant 0 : index
    %20 = vector.load %arg3[%c0_12, %c0_13, %c0_14] : memref<2x4x1xf32, #tpu.memory_space<vmem>>, vector<2x4x1xf32>
    %21 = vector.shape_cast %18 : vector<4x1xf32> to vector<1x4x1xf32>
    %22 = vector.broadcast %21 : vector<1x4x1xf32> to vector<2x4x1xf32>
    %23 = arith.mulf %19, %22 : vector<2x4x1xf32>
    %24 = vector.shape_cast %9 : vector<4x1xf32> to vector<1x4x1xf32>
    %25 = vector.broadcast %24 : vector<1x4x1xf32> to vector<2x4x1xf32>
    %26 = arith.mulf %25, %23 : vector<2x4x1xf32>
    %27 = arith.subf %20, %26 : vector<2x4x1xf32>
    %28 = vector.broadcast %23 : vector<2x4x1xf32> to vector<2x4x256xf32>
    %29 = arith.mulf %0, %28 : vector<2x4x256xf32>
    %30 = vector.broadcast %27 : vector<2x4x1xf32> to vector<2x4x256xf32>
    %31 = arith.addf %29, %30 : vector<2x4x256xf32>
    %c0_15 = arith.constant 0 : index
    %c0_16 = arith.constant 0 : index
    %c0_17 = arith.constant 0 : index
    %32 = vector.load %arg4[%c0_15, %c0_16, %c0_17] : memref<2x4x256xf32, #tpu.memory_space<vmem>>, vector<2x4x256xf32>
    tpu.vector_store %arg4[%c0_15, %c0_16, %c0_17], %31 {strides = array<i32>} : memref<2x4x256xf32, #tpu.memory_space<vmem>>, vector<2x4x256xf32>,
    return
  }
  func.func @transform_0(%arg0: i32) -> (i32, i32, i32) {
    %c0_i32 = arith.constant 0 : i32
    %c0_i32_0 = arith.constant 0 : i32
    %c0_i32_1 = arith.constant 0 : i32
    return %c0_i32, %arg0, %c0_i32_0 : i32, i32, i32
  }
  func.func @transform_1(%arg0: i32) -> (i32, i32, i32) {
    %c0_i32 = arith.constant 0 : i32
    %c0_i32_0 = arith.constant 0 : i32
    %c0_i32_1 = arith.constant 0 : i32
    return %c0_i32, %arg0, %c0_i32_0 : i32, i32, i32
  }
  func.func @transform_2(%arg0: i32) -> (i32, i32, i32) {
    %c0_i32 = arith.constant 0 : i32
    %c0_i32_0 = arith.constant 0 : i32
    %c0_i32_1 = arith.constant 0 : i32
    return %c0_i32, %arg0, %c0_i32_0 : i32, i32, i32
  }
  func.func @transform_3(%arg0: i32) -> (i32, i32, i32) {
    %c0_i32 = arith.constant 0 : i32
    %c0_i32_0 = arith.constant 0 : i32
    %c0_i32_1 = arith.constant 0 : i32
    return %c0_i32, %arg0, %c0_i32_0 : i32, i32, i32
  }
}

</mosaic_0001>

<llo_original>
// kernel: tpu_custom_call.1
$region0: #{tpu_custom_call.1}
  #allocation0 [shape = 'u32[]', space=smem, size = 0x4, offset = 0x4, fixed_abs, tag = 'smem constant byte address 0x4 - core index']
  #allocation1 [shape = 'u32[144,128]{1,0:T(1,128)}', space=vmem, size = 0x12000, scoped, tag = 'internal scratch']
  %s0 = inlined_call_operand.vmem [shape: f32[2,4,256], index: 0, kind: input, shape index: {}]
  %s1 = inlined_call_operand.vmem [shape: f32[2,4,1], index: 1, kind: input, shape index: {}]
  %s2 = inlined_call_operand.vmem [shape: f32[2,4,1], index: 2, kind: input, shape index: {}]
  %s3 = inlined_call_operand.hbm [shape: f32[2,4,256], index: 3, kind: output, shape index: {}]
  %s4 = sld [smem:[#allocation0]]
  $region22: #{tpu_custom_call.1} parent=0
    _
  %s6 = ssub.s32 1, %s4
  %s7 = scalar_select 0, %s6, %s4
  $region1: #{tpu_custom_call.1} parent=0
    #allocation2 [shape = 'u8[8192]{0}', space=vmem, size = 0x2000, scoped, tag = 'output window, operand 0, single buffered']
    #allocation3 [shape = 's32[1]{0}', space=sflag, size = 0x4, scoped, tag = 'scoped memory for tpu_custom_call.1']
    %8 = vsyncpa [#allocation3], 0
    // Predicated region
    $region2: #{tpu_custom_call.1} parent=1 // pred_check
      _
    $region3: #{tpu_custom_call.1} parent=1 // pred_check_branch
      %10 = sbr.rel (0) target = $region5
    $region4: #{tpu_custom_call.1} parent=1 // pred_region
      _
    $region5: #{tpu_custom_call.1} parent=1 // pred_fallthru
      _
    // Predicated region
    $region6: #{tpu_custom_call.1} parent=1 // pred_check
      _
    $region7: #{tpu_custom_call.1} parent=1 // pred_check_branch
      %12 = sbr.rel (0) target = $region9
    $region8: #{tpu_custom_call.1} parent=1 // pred_region
      _
    $region9: #{tpu_custom_call.1} parent=1 // pred_fallthru
      _
    // Predicated region
    $region10: #{tpu_custom_call.1} parent=1 // pred_check
      _
    $region11: #{tpu_custom_call.1} parent=1 // pred_check_branch
      %14 = sbr.rel (0) target = $region13
    $region12: #{tpu_custom_call.1} parent=1 // pred_region
      _
    $region13: #{tpu_custom_call.1} parent=1 // pred_fallthru
      _
    %v15 = vld [vmem:[%s0] sm:$0xff]
    %v16 = vld [vmem:[%s0 + $0x8] sm:$0xff]
    %v19 = vcombine.high %v15, %v15
    %v20 = vcombine.high %v16, %v16
    %vm23 = vcmask 1043456
    %v24 = vsel %vm23, %v15, 0.0
    %v25 = vsel %vm23, %v16, 0.0
    %v26 = vadd.f32 %v24, %v25
    %v27 = vsel %vm23, %v19, 0.0
    %v28 = vsel %vm23, %v20, 0.0
    %v29 = vadd.f32 %v27, %v28
    %v30 = vsel %vm23, %v26, 0.0
    %v31 = vsel %vm23, %v29, 0.0
    %v32 = vadd.f32 %v30, %v31
    %33 = vadd.xlane.f32.xlu0 %v32
    %v34 = vpop.xlane.xlu0 %33
    %v35 = vmul.f32 %v15, %v15
    %v36 = vmul.f32 %v16, %v16
    %v39 = vcombine.high %v35, %v35
    %v40 = vcombine.high %v36, %v36
    %v43 = vsel %vm23, %v35, 0.0
    %v44 = vsel %vm23, %v36, 0.0
    %v45 = vadd.f32 %v43, %v44
    %v46 = vsel %vm23, %v39, 0.0
    %v47 = vsel %vm23, %v40, 0.0
    %v48 = vadd.f32 %v46, %v47
    %v49 = vsel %vm23, %v45, 0.0
    %v50 = vsel %vm23, %v48, 0.0
    %v51 = vadd.f32 %v49, %v50
    %52 = vadd.xlane.f32.xlu0 %v51
    %v53 = vpop.xlane.xlu0 %52
    %v54 = vmul.f32 %v34, 0.001953125
    %v55 = vmul.f32 %v53, 0.001953125
    %v56 = vmul.f32 %v54, %v54
    %v57 = vsub.f32 %v55, %v56
    %v58 = vmax.f32 %v57, 0.0
    %v59 = vadd.f32 %v58, 1e-05
    %v60 = vrsqrt.pop %v59
    %v61 = vld [vmem:[%s1] sm:$0xf]
    %v62 = vld [vmem:[%s1 + $0x4] sm:$0xf]
    %v63 = vld [vmem:[%s2] sm:$0xf]
    %v64 = vld [vmem:[%s2 + $0x4] sm:$0xf]
    %v65 = vmul.f32 %v61, %v60
    %v66 = vmul.f32 %v62, %v60
    %v67 = vmul.f32 %v54, %v65
    %v68 = vmul.f32 %v54, %v66
    %v69 = vsub.f32 %v63, %v67
    %v70 = vsub.f32 %v64, %v68
    %72 = vset.pattern.permute.xlu0 0
    %73 = vperm.xlu0 %72, %v65
    %v74 = vpop.permute.xlu0 %73
    %76 = vset.pattern.permute.xlu0 0
    %77 = vperm.xlu0 %76, %v66
    %v78 = vpop.permute.xlu0 %77
    %v80 = vunpack.c.l.s4 839922192
    %v81 = vunpack.c.0.s8 %v80
    %v82 = vlaneseq
    %v83 = vshrl.u32 %v82, 7
    %v84 = vsub.s32 %v81, %v83
    %v85 = vrot.slane %v74, %v84
    %v87 = vunpack.c.l.s4 839922192
    %v88 = vunpack.c.0.s8 %v87
    %v89 = vlaneseq
    %v90 = vshrl.u32 %v89, 7
    %v91 = vsub.s32 %v88, %v90
    %v92 = vrot.slane %v78, %v91
    %v95 = vmul.f32 %v15, %v85
    %v96 = vmul.f32 %v16, %v92
    %98 = vset.pattern.permute.xlu0 0
    %99 = vperm.xlu0 %98, %v69
    %v100 = vpop.permute.xlu0 %99
    %102 = vset.pattern.permute.xlu0 0
    %103 = vperm.xlu0 %102, %v70
    %v104 = vpop.permute.xlu0 %103
    %v106 = vunpack.c.l.s4 839922192
    %v107 = vunpack.c.0.s8 %v106
    %v108 = vlaneseq
    %v109 = vshrl.u32 %v108, 7
    %v110 = vsub.s32 %v107, %v109
    %v111 = vrot.slane %v100, %v110
    %v113 = vunpack.c.l.s4 839922192
    %v114 = vunpack.c.0.s8 %v113
    %v115 = vlaneseq
    %v116 = vshrl.u32 %v115, 7
    %v117 = vsub.s32 %v114, %v116
    %v118 = vrot.slane %v104, %v117
    %v121 = vadd.f32 %v95, %v111
    %v122 = vadd.f32 %v96, %v118
    %123 = vst [vmem:[#allocation2] sm:$0xff] %v121
    %124 = vst [vmem:[#allocation2 + $0x8] sm:$0xff] %v122
    // Predicated region
    $region14: #{tpu_custom_call.1} parent=1 // pred_check
      _
    $region15: #{tpu_custom_call.1} parent=1 // pred_check_branch
      %126 = sbr.rel (0) target = $region17
    $region16: #{tpu_custom_call.1} parent=1 // pred_region
      %s128 = ssub.s32 256, 256
      %129 = vsyncadd [#allocation3], %s128
      %s130 = sshll.u32 [#allocation2], 4
      %s131 = int_to_ptr.vmem [resolvable:$true] %s130
      %136 = dma.vmem_to_hbm [thread:$0]  %s131, 256, %s3, [#allocation3], 128, 128, 8
    $region17: #{tpu_custom_call.1} parent=1 // pred_fallthru
      _
    // Predicated region
    $region18: #{tpu_custom_call.1} parent=1 // pred_check
      _
    $region19: #{tpu_custom_call.1} parent=1 // pred_check_branch
      %138 = sbr.rel (0) target = $region21
    $region20: #{tpu_custom_call.1} parent=1 // pred_region
      %139 = dma.done [#allocation3], 256
    $region21: #{tpu_custom_call.1} parent=1 // pred_fallthru
      _
    %140 = vsyncpa [#allocation3], 1

</llo_original>
